<compile_context>
chip_gen: v7x
topology: tpu7x:2x2x1
jax: 0.10.0
libtpu: 0.0.40
codegen_flags: <defaults>
</compile_context>

<pallas_src>
import math
import numpy as np
import jax
import jax.numpy as jnp
from jax.experimental import pallas as pl
from jax.experimental.pallas import tpu as pltpu

_VMEM_LIMIT = 32 * 1024 * 1024


def _cparams(grid_axes=0):
    if grid_axes:
        return pltpu.CompilerParams(dimension_semantics=("parallel",) * grid_axes,
                                    vmem_limit_bytes=_VMEM_LIMIT)
    return pltpu.CompilerParams(vmem_limit_bytes=_VMEM_LIMIT)


def _full(shape):
    return pl.BlockSpec(shape, lambda i: (0,) * len(shape))


# --------------------------------------------------------------------------
# log-mel + InstanceNorm1d
# --------------------------------------------------------------------------

def _log_instnorm_kernel(x_ref, o_ref):
    y = jnp.log(x_ref[0] + 1e-6)
    mean = jnp.mean(y, axis=1, keepdims=True)
    var = jnp.mean((y - mean) ** 2, axis=1, keepdims=True)
    o_ref[0] = (y - mean) * jax.lax.rsqrt(var + 1e-5)


def log_instancenorm(x):
    n, m, t = x.shape
    blk = pl.BlockSpec((1, m, t), lambda i: (i, 0, 0))
    return pl.pallas_call(
        _log_instnorm_kernel,
        out_shape=jax.ShapeDtypeStruct((n, m, t), jnp.float32),
        grid=(n,), in_specs=[blk], out_specs=blk,
        compiler_params=_cparams(1),
    )(x)


# --------------------------------------------------------------------------
# Conv2d (bias=False) + training-mode BatchNorm2d, two tiled Pallas passes
# --------------------------------------------------------------------------

def _make_conv_taps_kernel(kh, kw, sh, sw, cin, cout, wq, lc, relu_before):
    # Pass 1: accumulate kh*kw tap matmuls (bf16 in, fp32 acc) from shifted slices of the
    # phase-decomposed input; emit masked conv output + per-channel partial sum / sumsq.
    def kernel(xq_ref, w_ref, mask_ref, y_ref, ssum_ref, ssq_ref):
        acc = jnp.zeros((cout, lc), jnp.float32)
        for di in range(kh):
            qi, ri = di // sh, di % sh
            for dj in range(kw):
                qj, rj = dj // sw, dj % sw
                p = ri * sw + rj
                off = qi * wq + qj
                slab = xq_ref[0, p, :, pl.ds(off, lc)]        # (cin, lc) bf16
                w_t = w_ref[di * kw + dj]                     # (cout, cin) bf16
                if cin == 1:
                    # K=1: plain broadcast multiply-add on the VPU is cheaper than an MXU push.
                    acc = acc + w_t.astype(jnp.float32) * slab.astype(jnp.float32)
                else:
                    acc = acc + jnp.dot(w_t, slab, preferred_element_type=jnp.float32)
        if relu_before:
            acc = jnp.maximum(acc, 0.0)
        acc = acc * mask_ref[...]                             # zero invalid (garbage) lanes
        y_ref[0] = acc
        ssum_ref[0] = jnp.sum(acc, axis=1, keepdims=True)
        ssq_ref[0] = jnp.sum(acc * acc, axis=1, keepdims=True)
    return kernel


def _make_bn_apply_kernel(total_count, item_count, relu_after, eps=1e-5):
    # Pass 2: global BN stats from the tiny per-item partial sums, then normalize + affine
    # (+ optional ReLU); also emit per-item channel means (used by the SE layer).
    def kernel(y_ref, ssum_ref, ssq_ref, g_ref, b_ref, mask_ref, o_ref, pool_ref):
        s1 = jnp.sum(ssum_ref[...], axis=0)                   # (cout, 1)
        s2 = jnp.sum(ssq_ref[...], axis=0)                    # (cout, 1)
        mean = s1 * (1.0 / total_count)
        var = jnp.maximum(s2 * (1.0 / total_count) - mean * mean, 0.0)
        scale = g_ref[...] * jax.lax.rsqrt(var + eps)
        shift = b_ref[...] - mean * scale
        y = y_ref[0] * scale + shift
        if relu_after:
            y = jnp.maximum(y, 0.0)
        o_ref[0] = y
        pool_ref[0] = jnp.sum(y * mask_ref[...], axis=1, keepdims=True) * (1.0 / item_count)
    return kernel


def conv_bn(x, w, gamma, beta, stride, pad, relu_before=False, relu_after=False):
    """Conv2d(bias=False) + BatchNorm2d (+ optional ReLUs).

    x: (N, Cin, H, W) fp32, w: (Cout, Cin, kh, kw).
    Returns (y, pooled): y (N, Cout, Ho, Wo) fp32, pooled (N, Cout, 1) per-item channel means.
    """
    n, cin, h, wdt = x.shape
    cout, _, kh, kw = w.shape
    sh, sw = stride
    ph = pw = pad

    hp, wp = h + 2 * ph, wdt + 2 * pw
    ho = (hp - kh) // sh + 1
    wo = (wp - kw) // sw + 1
    hp2 = ((hp + sh - 1) // sh) * sh
    wp2 = ((wp + sw - 1) // sw) * sw
    hq, wq = hp2 // sh, wp2 // sw
    lc = ho * wq                                   # flattened output rows incl. (kw-1)/sw garbage cols
    max_off = ((kh - 1) // sh) * wq + (kw - 1) // sw
    lf = max(hq * wq, lc + max_off)

    # pad + phase-decompose (pure permutation; identity reshape for stride-1 convs) -> bf16
    xp = jnp.pad(x, ((0, 0), (0, 0), (ph, hp2 - h - ph), (pw, wp2 - wdt - pw)))
    if sh == 1 and sw == 1:
        xq = xp.reshape(n, 1, cin, hq * wq)
    else:
        xq = xp.reshape(n, cin, hq, sh, wq, sw)
        xq = xq.transpose(0, 3, 5, 1, 2, 4).reshape(n, sh * sw, cin, hq * wq)
    if lf > hq * wq:
        xq = jnp.pad(xq, ((0, 0), (0, 0), (0, 0), (0, lf - hq * wq)))
    xq = xq.astype(jnp.bfloat16)
    n_phase = xq.shape[1]

    wk = jnp.transpose(w, (2, 3, 0, 1)).reshape(kh * kw, cout, cin).astype(jnp.bfloat16)
    mask = jnp.asarray(np.tile(np.arange(wq) < wo, ho).astype(np.float32).reshape(1, lc))

    blk_y = pl.BlockSpec((1, cout, lc), lambda i: (i, 0, 0))
    blk_s = pl.BlockSpec((1, cout, 1), lambda i: (i, 0, 0))

    y, ssum, ssq = pl.pallas_call(
        _make_conv_taps_kernel(kh, kw, sh, sw, cin, cout, wq, lc, relu_before),
        grid=(n,),
        in_specs=[pl.BlockSpec((1, n_phase, cin, lf), lambda i: (i, 0, 0, 0)),
                  _full((kh * kw, cout, cin)),
                  _full((1, lc))],
        out_specs=[blk_y, blk_s, blk_s],
        out_shape=[jax.ShapeDtypeStruct((n, cout, lc), jnp.float32),
                   jax.ShapeDtypeStruct((n, cout, 1), jnp.float32),
                   jax.ShapeDtypeStruct((n, cout, 1), jnp.float32)],
        compiler_params=_cparams(1),
    )(xq, wk, mask)

    ybn, pooled = pl.pallas_call(
        _make_bn_apply_kernel(float(n * ho * wo), float(ho * wo), relu_after),
        grid=(n,),
        in_specs=[blk_y,
                  _full((n, cout, 1)), _full((n, cout, 1)),
                  _full((cout, 1)), _full((cout, 1)), _full((1, lc))],
        out_specs=[blk_y, blk_s],
        out_shape=[jax.ShapeDtypeStruct((n, cout, lc), jnp.float32),
                   jax.ShapeDtypeStruct((n, cout, 1), jnp.float32)],
        compiler_params=_cparams(1),
    )(y, ssum, ssq, gamma.reshape(cout, 1), beta.reshape(cout, 1), mask)

    ybn = ybn.reshape(n, cout, ho, wq)[:, :, :, :wo]      # drop garbage columns
    return ybn, pooled


# --------------------------------------------------------------------------
# SE layer (FCs batched over N) + residual add + ReLU
# --------------------------------------------------------------------------

def _se_fc_kernel(p_ref, w1_ref, b1_ref, w2_ref, b2_ref, o_ref):
    h = jnp.dot(p_ref[...], w1_ref[...], preferred_element_type=jnp.float32) + b1_ref[...]
    h = jnp.maximum(h, 0.0)
    s = jnp.dot(h, w2_ref[...], preferred_element_type=jnp.float32) + b2_ref[...]
    o_ref[...] = jax.nn.sigmoid(s)


def se_fc(pooled, w1, b1, w2, b2):
    # pooled: (N, C) -> SE scales (N, C); both FCs done once for the whole batch (tiny kernel).
    nb, c = pooled.shape
    vspec = pl.BlockSpec(memory_space=pltpu.MemorySpace.VMEM)
    return pl.pallas_call(
        _se_fc_kernel,
        out_shape=jax.ShapeDtypeStruct((nb, c), jnp.float32),
        in_specs=[vspec] * 5, out_specs=vspec,
        compiler_params=_cparams(0),
    )(pooled, w1, b1, w2, b2)


def _se_res_kernel(y_ref, r_ref, s_ref, o_ref):
    o_ref[0] = jnp.maximum(y_ref[0] * s_ref[0] + r_ref[0], 0.0)


def se_residual(y, res, s):
    n, c, m = y.shape
    blk = pl.BlockSpec((1, c, m), lambda i: (i, 0, 0))
    blk_s = pl.BlockSpec((1, c, 1), lambda i: (i, 0, 0))
    return pl.pallas_call(
        _se_res_kernel,
        out_shape=jax.ShapeDtypeStruct((n, c, m), jnp.float32),
        grid=(n,),
        in_specs=[blk, blk, blk_s],
        out_specs=blk,
        compiler_params=_cparams(1),
    )(y, res, s.reshape(n, c, 1))


# --------------------------------------------------------------------------
# freq-mean + SAP attentive pooling + final Linear
# --------------------------------------------------------------------------

def _sap_fc_kernel(x_ref, wsap_ref, bsap_ref, att_ref, wfc_ref, bfc_ref, o_ref):
    x = jnp.mean(x_ref[0], axis=0)                                     # (C, T) freq-mean
    h = jnp.tanh(jnp.dot(wsap_ref[...], x, preferred_element_type=jnp.float32) + bsap_ref[...])
    w = jnp.dot(att_ref[...], h, preferred_element_type=jnp.float32)   # (1, T)
    w = w - jnp.max(w, axis=1, keepdims=True)
    e = jnp.exp(w)
    w = e / jnp.sum(e, axis=1, keepdims=True)                          # softmax over time
    pooled = jnp.sum(x * w, axis=1, keepdims=True)                     # (C, 1)
    o_ref[0] = jnp.dot(wfc_ref[...], pooled, preferred_element_type=jnp.float32) + bfc_ref[...]


def sap_fc(x, wsap, bsap, att_t, wfc, bfc):
    n, c, h4, w4 = x.shape
    emb = wfc.shape[0]
    xt = jnp.transpose(x, (0, 2, 1, 3))                                # (N, H, C, T)
    out = pl.pallas_call(
        _sap_fc_kernel,
        out_shape=jax.ShapeDtypeStruct((n, emb, 1), jnp.float32),
        grid=(n,),
        in_specs=[pl.BlockSpec((1, h4, c, w4), lambda i: (i, 0, 0, 0)),
                  _full((c, c)), _full((c, 1)), _full((1, c)),
                  _full((emb, c)), _full((emb, 1))],
        out_specs=pl.BlockSpec((1, emb, 1), lambda i: (i, 0, 0)),
        compiler_params=_cparams(1),
    )(xt, wsap, bsap, att_t, wfc, bfc)
    return out.reshape(n, emb)


# --------------------------------------------------------------------------
# Mel-spectrogram front-end (plain JAX preprocessing)
# --------------------------------------------------------------------------

def _mel_fbanks(n_freqs, f_min, f_max, n_mels, sr):
    hz2mel = lambda f: 2595.0 * np.log10(1.0 + f / 700.0)
    mel2hz = lambda m: 700.0 * (10.0 ** (m / 2595.0) - 1.0)
    all_freqs = np.linspace(0.0, sr // 2, n_freqs)
    m_pts = np.linspace(hz2mel(f_min), hz2mel(f_max), n_mels + 2)
    f_pts = mel2hz(m_pts)
    f_diff = f_pts[1:] - f_pts[:-1]
    slopes = f_pts[None, :] - all_freqs[:, None]
    down = -slopes[:, :-2] / f_diff[:-1]
    up = slopes[:, 2:] / f_diff[1:]
    return jnp.asarray(np.maximum(0.0, np.minimum(down, up)), jnp.float32)


def mel_spectrogram(wav, n_fft=512, win_length=400, hop=160, n_mels=40, sr=16000):
    # TODO(synk): STFT/FFT has no Pallas TPU primitive; the MelSpectrogram front-end stays in plain JAX.
    n = np.arange(win_length)
    window = 0.54 - 0.46 * np.cos(2.0 * np.pi * n / win_length)
    lpad = (n_fft - win_length) // 2
    window = jnp.asarray(np.pad(window, (lpad, n_fft - win_length - lpad)), jnp.float32)

    pad = n_fft // 2
    x = jnp.pad(wav, ((0, 0), (pad, pad)), mode="reflect")
    n_frames = 1 + wav.shape[1] // hop
    idx = np.arange(n_frames)[:, None] * hop + np.arange(n_fft)[None, :]
    frames = x[:, idx] * window
    spec = jnp.abs(jnp.fft.rfft(frames, n=n_fft, axis=-1)) ** 2
    fb = _mel_fbanks(n_fft // 2 + 1, 0.0, sr / 2.0, n_mels, sr)
    mel = jnp.einsum("ntf,fm->nmt", spec, fb)
    return mel.astype(jnp.float32)                                     # (N, n_mels, T)


# --------------------------------------------------------------------------
# Parameters (deterministic synthetic init) and forward pass
# --------------------------------------------------------------------------

class _Keys:
    def __init__(self, seed):
        self._k = jax.random.PRNGKey(seed)

    def __call__(self):
        self._k, k = jax.random.split(self._k)
        return k


def _conv_weight(kg, cout, cin, kh, kw):
    std = math.sqrt(2.0 / (cout * kh * kw))            # kaiming_normal_, fan_out, relu
    return std * jax.random.normal(kg(), (cout, cin, kh, kw), jnp.float32)


def _linear_t(kg, fan_in, fan_out):
    # weight as W.T (fan_in, fan_out), bias as row (1, fan_out)   -- for row-major batched FCs
    bound = 1.0 / math.sqrt(fan_in)
    wt = jax.random.uniform(kg(), (fan_in, fan_out), jnp.float32, -bound, bound)
    b = jax.random.uniform(kg(), (1, fan_out), jnp.float32, -bound, bound)
    return wt, b


def _linear_native(kg, fan_in, fan_out):
    # weight (fan_out, fan_in), bias as column (fan_out, 1)       -- for channels-first kernels
    bound = 1.0 / math.sqrt(fan_in)
    wmat = jax.random.uniform(kg(), (fan_out, fan_in), jnp.float32, -bound, bound)
    b = jax.random.uniform(kg(), (fan_out, 1), jnp.float32, -bound, bound)
    return wmat, b


def init_params(kg, num_filters, layers, embedding_dim, reduction=8):
    p = {"conv1_w": _conv_weight(kg, num_filters[0], 1, 7, 7),
         "bn1_g": jnp.ones((num_filters[0],), jnp.float32),
         "bn1_b": jnp.zeros((num_filters[0],), jnp.float32)}
    inplanes = num_filters[0]
    strides = [(1, 1), (2, 2), (2, 2), (1, 1)]
    all_blocks = []
    for planes, nb, st in zip(num_filters, layers, strides):
        blocks = []
        for bi in range(nb):
            stride = st if bi == 0 else (1, 1)
            blk = {"stride": stride,
                   "conv1_w": _conv_weight(kg, planes, inplanes, 3, 3),
                   "bn1_g": jnp.ones((planes,), jnp.float32),
                   "bn1_b": jnp.zeros((planes,), jnp.float32),
                   "conv2_w": _conv_weight(kg, planes, planes, 3, 3),
                   "bn2_g": jnp.ones((planes,), jnp.float32),
                   "bn2_b": jnp.zeros((planes,), jnp.float32)}
            cr = planes // reduction
            blk["se_w1"], blk["se_b1"] = _linear_t(kg, planes, cr)
            blk["se_w2"], blk["se_b2"] = _linear_t(kg, cr, planes)
            if bi == 0 and (st != (1, 1) or inplanes != planes):
                blk["ds_w"] = _conv_weight(kg, planes, inplanes, 1, 1)
                blk["ds_g"] = jnp.ones((planes,), jnp.float32)
                blk["ds_b"] = jnp.zeros((planes,), jnp.float32)
            inplanes = planes
            blocks.append(blk)
        all_blocks.append(blocks)
    p["blocks"] = all_blocks
    c = num_filters[3]
    p["sap_w"], p["sap_b"] = _linear_native(kg, c, c)
    p["att_t"] = jax.random.normal(kg(), (1, c), jnp.float32) * math.sqrt(2.0 / (c + 1))
    p["fc_w"], p["fc_b"] = _linear_native(kg, c, embedding_dim)
    return p


def se_basic_block(x, blk):
    # SEBasicBlock (ResNetSE34L): conv1 -> relu -> bn1 -> conv2 -> bn2 -> SE -> +residual -> relu
    out1, _ = conv_bn(x, blk["conv1_w"], blk["bn1_g"], blk["bn1_b"],
                      stride=blk["stride"], pad=1, relu_before=True)
    out2, pooled = conv_bn(out1, blk["conv2_w"], blk["bn2_g"], blk["bn2_b"],
                           stride=(1, 1), pad=1)
    if "ds_w" in blk:
        residual, _ = conv_bn(x, blk["ds_w"], blk["ds_g"], blk["ds_b"],
                              stride=blk["stride"], pad=0)
    else:
        residual = x
    n, c, ho, wo = out2.shape
    s = se_fc(pooled.reshape(n, c), blk["se_w1"], blk["se_b1"], blk["se_w2"], blk["se_b2"])
    out = se_residual(out2.reshape(n, c, ho * wo), residual.reshape(n, c, ho * wo), s)
    return out.reshape(n, c, ho, wo)


def resnet_se_forward(params, wav, n_mels=40):
    mel = mel_spectrogram(wav, n_mels=n_mels)            # torchfb(x)              (N, n_mels, T)
    x = log_instancenorm(mel)                            # +1e-6, log, InstanceNorm1d (Pallas)
    x = x[:, None, :, :]                                 # unsqueeze(1) -> (N, 1, n_mels, T)
    x, _ = conv_bn(x, params["conv1_w"], params["bn1_g"], params["bn1_b"],
                   stride=(2, 1), pad=3, relu_after=True)
    for blocks in params["blocks"]:                      # layer1..layer4
        for blk in blocks:
            x = se_basic_block(x, blk)
    return sap_fc(x, params["sap_w"], params["sap_b"], params["att_t"],
                  params["fc_w"], params["fc_b"])


if __name__ == "__main__":
    num_filters = [8, 16, 32, 64]   # small synthetic config (ResNetSE34L uses [16, 32, 64, 128])
    layers = [1, 1, 1, 1]
    embedding_dim = 32

    kg = _Keys(0)
    params = init_params(kg, num_filters, layers, embedding_dim)

    wav = jax.random.normal(jax.random.PRNGKey(0), (2, 3200), jnp.float32)   # (batch, samples)
    out = resnet_se_forward(params, wav)
    out = jax.block_until_ready(out)

    assert out.shape == (2, embedding_dim), out.shape
    assert bool(jnp.all(jnp.isfinite(out)))
    print("KERNEL_OK")
</pallas_src>

<mosaic_0001>
module attributes {stable_mosaic.version = 11 : i64} {
  func.func @_log_instnorm_kernel(%arg0: i32, %arg1: memref<1x40x21xf32, #tpu.memory_space<vmem>>, %arg2: memref<1x40x21xf32, #tpu.memory_space<vmem>>) attributes {dimension_semantics = [#tpu.dimension_semantics<parallel>], iteration_bounds = array<i64: 2>, scalar_prefetch = 0 : i64, scratch_operands = 0 : i64, tpu.core_type = #tpu.core_type<tc>, window_params = [{transform_indices = @transform_0, window_bounds = array<i64: 1, 40, 21>}, {transform_indices = @transform_1, window_bounds = array<i64: 1, 40, 21>}]} {
    %c0 = arith.constant 0 : index
    %c0_0 = arith.constant 0 : index
    %c0_1 = arith.constant 0 : index
    %0 = vector.load %arg1[%c0, %c0_0, %c0_1] : memref<1x40x21xf32, #tpu.memory_space<vmem>>, vector<1x40x21xf32>
    %1 = vector.shape_cast %0 : vector<1x40x21xf32> to vector<40x21xf32>
    %cst = arith.constant 9.99999997E-7 : f32
    %2 = vector.broadcast %cst : f32 to vector<40x21xf32>
    %3 = arith.addf %1, %2 : vector<40x21xf32>
    %4 = math.log %3 : vector<40x21xf32>
    %cst_2 = arith.constant dense<0.000000e+00> : vector<40xf32>
    %5 = vector.multi_reduction <add>, %4, %cst_2 [1] : vector<40x21xf32> to vector<40xf32>
    %6 = vector.shape_cast %5 : vector<40xf32> to vector<40x1xf32>
    %cst_3 = arith.constant 2.100000e+01 : f32
    %7 = vector.broadcast %cst_3 : f32 to vector<40x1xf32>
    %8 = arith.divf %6, %7 : vector<40x1xf32>
    %9 = vector.broadcast %8 : vector<40x1xf32> to vector<40x21xf32>
    %10 = arith.subf %4, %9 : vector<40x21xf32>
    %11 = arith.mulf %10, %10 : vector<40x21xf32>
    %cst_4 = arith.constant dense<0.000000e+00> : vector<40xf32>
    %12 = vector.multi_reduction <add>, %11, %cst_4 [1] : vector<40x21xf32> to vector<40xf32>
    %13 = vector.shape_cast %12 : vector<40xf32> to vector<40x1xf32>
    %cst_5 = arith.constant 2.100000e+01 : f32
    %14 = vector.broadcast %cst_5 : f32 to vector<40x1xf32>
    %15 = arith.divf %13, %14 : vector<40x1xf32>
    %16 = vector.broadcast %8 : vector<40x1xf32> to vector<40x21xf32>
    %17 = arith.subf %4, %16 : vector<40x21xf32>
    %cst_6 = arith.constant 9.99999974E-6 : f32
    %18 = vector.broadcast %cst_6 : f32 to vector<40x1xf32>
    %19 = arith.addf %15, %18 : vector<40x1xf32>
    %20 = math.rsqrt %19 : vector<40x1xf32>
    %21 = vector.broadcast %20 : vector<40x1xf32> to vector<40x21xf32>
    %22 = arith.mulf %17, %21 : vector<40x21xf32>
    %c0_7 = arith.constant 0 : index
    %c0_8 = arith.constant 0 : index
    %c0_9 = arith.constant 0 : index
    %23 = vector.load %arg2[%c0_7, %c0_8, %c0_9] : memref<1x40x21xf32, #tpu.memory_space<vmem>>, vector<1x40x21xf32>
    %24 = vector.shape_cast %23 : vector<1x40x21xf32> to vector<40x21xf32>
    %25 = vector.shape_cast %22 : vector<40x21xf32> to vector<1x40x21xf32>
    tpu.vector_store %arg2[%c0_7, %c0_8, %c0_9], %25 {strides = array<i32>} : memref<1x40x21xf32, #tpu.memory_space<vmem>>, vector<1x40x21xf32>,
    return
  }
  func.func @transform_0(%arg0: i32) -> (i32, i32, i32) {
    %c0_i32 = arith.constant 0 : i32
    %c0_i32_0 = arith.constant 0 : i32
    %c0_i32_1 = arith.constant 0 : i32
    return %arg0, %c0_i32, %c0_i32_0 : i32, i32, i32
  }
  func.func @transform_1(%arg0: i32) -> (i32, i32, i32) {
    %c0_i32 = arith.constant 0 : i32
    %c0_i32_0 = arith.constant 0 : i32
    %c0_i32_1 = arith.constant 0 : i32
    return %arg0, %c0_i32, %c0_i32_0 : i32, i32, i32
  }
}

</mosaic_0001>

<llo_original>
// kernel: tpu_custom_call.1
$region0: #{tpu_custom_call.1}
  #allocation0 [shape = 'u32[]', space=smem, size = 0x4, offset = 0x4, fixed_abs, tag = 'smem constant byte address 0x4 - core index']
  #allocation1 [shape = 'u32[144,128]{1,0:T(1,128)}', space=vmem, size = 0x12000, scoped, tag = 'internal scratch']
  %s0 = inlined_call_operand.vmem [shape: f32[2,40,21], index: 0, kind: input, shape index: {}]
  %s1 = inlined_call_operand.vmem [shape: f32[2,40,21], index: 1, kind: output, shape index: {}]
  %s2 = sld [smem:[#allocation0]]
  $region37: #{tpu_custom_call.1} parent=0
    _
  %s4 = ssub.s32 1, %s2
  %s5 = scalar_select 0, %s4, %s2
  loop: start=0, step=1, limit=4
  $region2: #{tpu_custom_call.1} parent=0 // loop_pre_header
    _
  $region3: #{tpu_custom_call.1} parent=0 // loop_header
    %s7 = sphi 0, %s11
    %p8 = scmp.ge.s32.totalorder %s7, 4
    %s17 = sphi 0, %s19
    %s20 = sphi 0, %s17
    %s21 = sphi 0, %s20
    %s37 = sphi 0, %s21
    %s43 = sphi 0, %s45
    %s46 = sphi 0, %s43
    %s47 = sphi 0, %s46
    %s63 = sphi 0, %s47
  $region4: #{tpu_custom_call.1} parent=0 // loop_header_branch
    %10 = sbr.rel (%p8) target = $region8
  $region5: #{tpu_custom_call.1} parent=0 // loop_body
    %s12 = ssub.s32 %s7, 1
    %s13 = ssub.s32 %s7, 2
    %s14 = sadd.s32 %s7, 1
    %s15 = ssub.s32 %s7, %s14
    %p16 = scmp.eq.s32.totalorder %s15, 0
    %s18 = sadd.s32 %s17, 1
    %s19 = scalar_select %p16, %s17, %s18
    %p22 = pneg %p16
    %p23 = scmp.eq.s32.totalorder %s7, 1
    %p24 = por %p22, %p23
    %p25 = scmp.ne.s32.totalorder %s17, %s20
    %p26 = scmp.eq.s32.totalorder %s7, 0
    %p27 = por %p25, %p26
    %p28 = scmp.ne.s32.totalorder %s17, %s20
    %p29 = scmp.eq.s32.totalorder %s12, 1
    %p30 = por %p28, %p29
    %p31 = scmp.ne.s32.totalorder %s20, %s21
    %p32 = scmp.eq.s32.totalorder %s12, 0
    %p33 = por %p31, %p32
    %p34 = scmp.ne.s32.totalorder %s20, %s21
    %p35 = scmp.eq.s32.totalorder %s13, 1
    %p36 = por %p34, %p35
    %p38 = scmp.ne.s32.totalorder %s21, %s37
    %p39 = scmp.eq.s32.totalorder %s13, 0
    %p40 = por %p38, %p39
    %s41 = ssub.s32 %s7, %s14
    %p42 = scmp.eq.s32.totalorder %s41, 0
    %s44 = sadd.s32 %s43, 1
    %s45 = scalar_select %p42, %s43, %s44
    %p48 = pneg %p42
    %p49 = scmp.eq.s32.totalorder %s7, 1
    %p50 = por %p48, %p49
    %p51 = scmp.ne.s32.totalorder %s43, %s46
    %p52 = scmp.eq.s32.totalorder %s7, 0
    %p53 = por %p51, %p52
    %p54 = scmp.ne.s32.totalorder %s43, %s46
    %p55 = scmp.eq.s32.totalorder %s12, 1
    %p56 = por %p54, %p55
    %p57 = scmp.ne.s32.totalorder %s46, %s47
    %p58 = scmp.eq.s32.totalorder %s12, 0
    %p59 = por %p57, %p58
    %p60 = scmp.ne.s32.totalorder %s46, %s47
    %p61 = scmp.eq.s32.totalorder %s13, 1
    %p62 = por %p60, %p61
    %p64 = scmp.ne.s32.totalorder %s47, %s63
    %p65 = scmp.eq.s32.totalorder %s13, 0
    %p66 = por %p64, %p65
    %p67 = scmp.le.s32.totalorder 1, %s7
    %p68 = scmp.lt.s32.totalorder %s7, 3
    %p69 = pnand %p67, %p68
    %p70 = pneg %p69
    // Predicated region
    $region9: #{tpu_custom_call.1} parent=5 // pred_check
      _
    $region10: #{tpu_custom_call.1} parent=5 // pred_check_branch
      %72 = sbr.rel (%p69) target = $region12
    $region11: #{tpu_custom_call.1} parent=5 // pred_region
      %s73 = ssub.s32 %s7, 1
    $region12: #{tpu_custom_call.1} parent=5 // pred_fallthru
      _
    %p74 = scmp.lt.s32.totalorder %s7, 2
    // Predicated region
    $region13: #{tpu_custom_call.1} parent=5 // pred_check
      %p75 = pneg %p74
    $region14: #{tpu_custom_call.1} parent=5 // pred_check_branch
      %77 = sbr.rel (%p75) target = $region16
    $region15: #{tpu_custom_call.1} parent=5 // pred_region
      // Predicated region
      $region17: #{tpu_custom_call.1} parent=15 // pred_check
        %p78 = pneg %p27
      $region18: #{tpu_custom_call.1} parent=15 // pred_check_branch
        %80 = sbr.rel (%p78) target = $region20
      $region19: #{tpu_custom_call.1} parent=15 // pred_region
        %p81 = scmp.lt.s32.totalorder %s7, 1
        %s82 = scalar_select %p81, %s7, 1
        %s83 = smul.addr %s82, 5
        %s84 = smul.addr %s83, 8
        %s85 = scalar_lea.vmem %s0, %s84
      $region20: #{tpu_custom_call.1} parent=15 // pred_fallthru
        _
    $region16: #{tpu_custom_call.1} parent=5 // pred_fallthru
      _
    %p86 = scmp.le.s32.totalorder 1, %s7
    %p87 = scmp.lt.s32.totalorder %s7, 3
    %p88 = pnand %p86, %p87
    %p89 = pneg %p88
    // Predicated region
    $region21: #{tpu_custom_call.1} parent=5 // pred_check
      _
    $region22: #{tpu_custom_call.1} parent=5 // pred_check_branch
      %91 = sbr.rel (%p88) target = $region24
    $region23: #{tpu_custom_call.1} parent=5 // pred_region
      %s92 = ssub.s32 %s7, 1
      %p93 = scmp.lt.s32.totalorder %s12, 1
      %s94 = scalar_select %p93, %s12, 1
      %s95 = smul.addr %s94, 5
      %s96 = smul.addr %s95, 8
      %s97 = scalar_lea.vmem %s0, %s96
      %p98 = pneg %p33
      %p99 = pneg %p30
      %p100 = pneg %p59
      %p101 = pneg %p56
      %p102 = scmp.lt.s32.totalorder %s12, 1
      %s103 = scalar_select %p102, %s12, 1
      %s104 = smul.addr %s103, 5
      %s105 = smul.addr %s104, 8
      %s106 = scalar_lea.vmem %s1, %s105
      %p107 = scmp.lt.s32.totalorder %s12, 1
      %s108 = scalar_select %p107, %s12, 1
      %s109 = smul.addr %s108, 5
      %s110 = smul.addr %s109, 8
      %s111 = scalar_lea.vmem %s0, %s110
      %p112 = scmp.lt.s32.totalorder %s12, 1
      %s113 = scalar_select %p112, %s12, 1
      %s114 = smul.addr %s113, 5
      %s115 = smul.addr %s114, 8
      %s116 = scalar_lea.vmem %s1, %s115
      %v117 = vld [vmem:[%s111] sm:$0xff]
      %v118 = vld [vmem:[%s111 + $0x8] sm:$0xff]
      %v119 = vld [vmem:[%s111 + $0x10] sm:$0xff]
      %v120 = vld [vmem:[%s111 + $0x18] sm:$0xff]
      %v121 = vld [vmem:[%s111 + $0x20] sm:$0xff]
      %v122 = vadd.f32 %v117, 1e-06
      %v123 = vadd.f32 %v118, 1e-06
      %v124 = vadd.f32 %v119, 1e-06
      %v125 = vadd.f32 %v120, 1e-06
      %v126 = vadd.f32 %v121, 1e-06
      %v127 = vlog2.pop %v122
      %v128 = vmul.f32 %v127, 0.6931472
      %v129 = vlog2.pop %v123
      %v130 = vmul.f32 %v129, 0.6931472
      %v131 = vlog2.pop %v124
      %v132 = vmul.f32 %v131, 0.6931472
      %v133 = vlog2.pop %v125
      %v134 = vmul.f32 %v133, 0.6931472
      %v135 = vlog2.pop %v126
      %v136 = vmul.f32 %v135, 0.6931472
      %vm137 = vcmask 171008
      %v138 = vsel %vm137, %v128, 0.0
      %139 = vadd.xlane.f32.xlu0 %v138
      %v140 = vpop.xlane.xlu0 %139
      %v141 = vsel %vm137, %v130, 0.0
      %142 = vadd.xlane.f32.xlu0 %v141
      %v143 = vpop.xlane.xlu0 %142
      %v144 = vsel %vm137, %v132, 0.0
      %145 = vadd.xlane.f32.xlu0 %v144
      %v146 = vpop.xlane.xlu0 %145
      %v147 = vsel %vm137, %v134, 0.0
      %148 = vadd.xlane.f32.xlu0 %v147
      %v149 = vpop.xlane.xlu0 %148
      %v150 = vsel %vm137, %v136, 0.0
      %151 = vadd.xlane.f32.xlu0 %v150
      %v152 = vpop.xlane.xlu0 %151
      %v153 = vrcp.pop 21.0
      %v154 = vmul.f32 %v140, %v153
      %v155 = vmul.f32 %v143, %v153
      %v156 = vmul.f32 %v146, %v153
      %v157 = vmul.f32 %v149, %v153
      %v158 = vmul.f32 %v152, %v153
      %v159 = vsub.f32 %v128, %v154
      %v160 = vsub.f32 %v130, %v155
      %v161 = vsub.f32 %v132, %v156
      %v162 = vsub.f32 %v134, %v157
      %v163 = vsub.f32 %v136, %v158
      %v164 = vmul.f32 %v159, %v159
      %v165 = vmul.f32 %v160, %v160
      %v166 = vmul.f32 %v161, %v161
      %v167 = vmul.f32 %v162, %v162
      %v168 = vmul.f32 %v163, %v163
      %v169 = vsel %vm137, %v164, 0.0
      %170 = vadd.xlane.f32.xlu0 %v169
      %v171 = vpop.xlane.xlu0 %170
      %v172 = vsel %vm137, %v165, 0.0
      %173 = vadd.xlane.f32.xlu0 %v172
      %v174 = vpop.xlane.xlu0 %173
      %v175 = vsel %vm137, %v166, 0.0
      %176 = vadd.xlane.f32.xlu0 %v175
      %v177 = vpop.xlane.xlu0 %176
      %v178 = vsel %vm137, %v167, 0.0
      %179 = vadd.xlane.f32.xlu0 %v178
      %v180 = vpop.xlane.xlu0 %179
      %v181 = vsel %vm137, %v168, 0.0
      %182 = vadd.xlane.f32.xlu0 %v181
      %v183 = vpop.xlane.xlu0 %182
      %v184 = vmul.f32 %v171, %v153
      %v185 = vmul.f32 %v174, %v153
      %v186 = vmul.f32 %v177, %v153
      %v187 = vmul.f32 %v180, %v153
      %v188 = vmul.f32 %v183, %v153
      %v189 = vadd.f32 %v184, 1e-05
      %v190 = vadd.f32 %v185, 1e-05
      %v191 = vadd.f32 %v186, 1e-05
      %v192 = vadd.f32 %v187, 1e-05
      %v193 = vadd.f32 %v188, 1e-05
      %v194 = vrsqrt.pop %v189
      %v195 = vrsqrt.pop %v190
      %v196 = vrsqrt.pop %v191
      %v197 = vrsqrt.pop %v192
      %v198 = vrsqrt.pop %v193
      %v199 = vmul.f32 %v159, %v194
      %v200 = vmul.f32 %v160, %v195
      %v201 = vmul.f32 %v161, %v196
      %v202 = vmul.f32 %v162, %v197
      %v203 = vmul.f32 %v163, %v198
      %204 = vst.msk [vmem:[%s116] sm:$0xff] %vm137, %v199
      %205 = vst.msk [vmem:[%s116 + $0x8] sm:$0xff] %vm137, %v200
      %206 = vst.msk [vmem:[%s116 + $0x10] sm:$0xff] %vm137, %v201
      %207 = vst.msk [vmem:[%s116 + $0x18] sm:$0xff] %vm137, %v202
      %208 = vst.msk [vmem:[%s116 + $0x20] sm:$0xff] %vm137, %v203
      %p209 = scmp.lt.s32.totalorder %s12, 1
      %s210 = scalar_select %p209, %s12, 1
      %s211 = smul.addr %s210, 5
      %s212 = smul.addr %s211, 8
      %s213 = scalar_lea.vmem %s1, %s212
      // Predicated region
      $region25: #{tpu_custom_call.1} parent=23 // pred_check
        %p214 = pneg %p56
      $region26: #{tpu_custom_call.1} parent=23 // pred_check_branch
        %216 = sbr.rel (%p214) target = $region28
      $region27: #{tpu_custom_call.1} parent=23 // pred_region
        _
      $region28: #{tpu_custom_call.1} parent=23 // pred_fallthru
        _
    $region24: #{tpu_custom_call.1} parent=5 // pred_fallthru
      _
    %p217 = scmp.le.s32.totalorder 2, %s7
    // Predicated region
    $region29: #{tpu_custom_call.1} parent=5 // pred_check
      %p218 = pneg %p217
    $region30: #{tpu_custom_call.1} parent=5 // pred_check_branch
      %220 = sbr.rel (%p218) target = $region32
    $region31: #{tpu_custom_call.1} parent=5 // pred_region
      %s221 = ssub.s32 %s7, 2
      // Predicated region
      $region33: #{tpu_custom_call.1} parent=31 // pred_check
        %p222 = pneg %p62
      $region34: #{tpu_custom_call.1} parent=31 // pred_check_branch
        %224 = sbr.rel (%p222) target = $region36
      $region35: #{tpu_custom_call.1} parent=31 // pred_region
        %p225 = scmp.lt.s32.totalorder %s13, 1
        %s226 = scalar_select %p225, %s13, 1
        %s227 = smul.addr %s226, 5
        %s228 = smul.addr %s227, 8
        %s229 = scalar_lea.vmem %s1, %s228
      $region36: #{tpu_custom_call.1} parent=31 // pred_fallthru
        _
    $region32: #{tpu_custom_call.1} parent=5 // pred_fallthru
      _
  $region6: #{tpu_custom_call.1} parent=0 // loop_footer
    %s11 = sadd.s32 1, %s7
  $region7: #{tpu_custom_call.1} parent=0 // loop_footer_branch
    %6 = sbr.rel target = $region3
  $region8: #{tpu_custom_call.1} parent=0 // loop_exit
    _

</llo_original>
